<compile_context>
chip_gen: v7x
topology: tpu7x:2x2x1
jax: 0.10.0
libtpu: 0.0.40
codegen_flags: <defaults>
</compile_context>

<pallas_src>
import functools
from functools import lru_cache

import numpy as np

import jax
import jax.numpy as jnp
from jax.experimental import pallas as pl
from jax.experimental.pallas import tpu as pltpu


# ----------------------------------------------------------------------------
# Host-side weight construction (cached).
# ----------------------------------------------------------------------------
@lru_cache(maxsize=None)
def _lanczos_weights(in_size: int, out_size: int, out_total: int, offset: int,
                     transpose: bool = False, a: float = 3.0):
    """PIL-style separable Lanczos-3 resample matrix, with the pad folded in.

    Returns a bf16 device array of shape (out_total, in_size) such that
    `out = W @ in` places the resized signal in rows [offset, offset+out_size)
    and zeros elsewhere.  If `transpose`, returns (in_size, out_total).
    """
    scale = in_size / out_size              # > 1.0 means downsampling
    filt_scale = max(scale, 1.0)
    centers = (np.arange(out_size, dtype=np.float64) + 0.5) * scale - 0.5
    idx = np.arange(in_size, dtype=np.float64)
    x = (idx[None, :] - centers[:, None]) / filt_scale      # (out, in)
    ax = np.abs(x)
    with np.errstate(divide="ignore", invalid="ignore"):
        core = a * np.sin(np.pi * x) * np.sin(np.pi * x / a) / (np.pi ** 2 * x ** 2)
    w = np.where(ax < 1e-8, 1.0, core)
    w = np.where(ax < a, w, 0.0)
    w = w / w.sum(axis=1, keepdims=True)    # PIL renormalizes the window
    # TODO(synk): exact PIL LANCZOS boundary handling (window clipping at the
    # image edge) is approximated by dense-weight renormalization.

    full = np.zeros((out_total, in_size), dtype=np.float32)
    full[offset:offset + out_size] = w
    if transpose:
        full = np.ascontiguousarray(full.T)                 # (in, out_total)
    return jnp.asarray(full, dtype=jnp.bfloat16)


def _pick_w_tile(W: int) -> int:
    """Tile the W contraction axis only when it splits into lane-aligned
    chunks; otherwise use a single block (small / ragged widths)."""
    if W % 128 == 0:
        for tw in (512, 384, 256, 128):
            if W % tw == 0:
                return tw
    # TODO(synk): for very large W that is not a multiple of 128, zero-pad W
    # up to a multiple of 128 (zero weight rows contribute nothing) so the
    # reduction can still be tiled on v7x's smaller VMEM.
    return W


# ----------------------------------------------------------------------------
# Pallas kernel
# ----------------------------------------------------------------------------
def _fit_kernel(img_ref, wh_ref, wwt_ref, out_ref, acc_ref, *,
                C, H, hnew, wnew, tpad, lpad, pad_val):
    # img_ref : (C*H, tw)  bf16-castable input tile (W-tile of all channels)
    # wh_ref  : (hout, H)  bf16 height weights (pad rows are zero)
    # wwt_ref : (tw, wout) bf16 width weights  (pad cols are zero)
    # out_ref : (C, hout, wout) output (resident across the W grid axis)
    # acc_ref : (C*H, wout) f32 accumulator for the width pass
    k = pl.program_id(0)

    @pl.when(k == 0)
    def _init():
        acc_ref[...] = jnp.zeros_like(acc_ref)

    # Width pass: one fused MXU matmul over all channels (M = C*H fills the
    # MXU far better than per-channel M = hnew), accumulated over W tiles.
    img_blk = img_ref[...].astype(jnp.bfloat16)
    acc_ref[...] += jnp.dot(img_blk, wwt_ref[...],
                            preferred_element_type=jnp.float32)

    @pl.when(k == pl.num_programs(0) - 1)
    def _finish():
        hout, wout = out_ref.shape[1], out_ref.shape[2]
        t = acc_ref[...].astype(jnp.bfloat16)            # (C*H, wout)
        wh = wh_ref[...]                                 # (hout, H)

        if pad_val is not None:
            rows = jax.lax.broadcasted_iota(jnp.int32, (hout, wout), 0)
            cols = jax.lax.broadcasted_iota(jnp.int32, (hout, wout), 1)
            interior = ((rows >= tpad) & (rows < tpad + hnew)
                        & (cols >= lpad) & (cols < lpad + wnew))

        # Height pass: small static per-channel loop (C is tiny, e.g. 3).
        for c in range(C):
            res = jnp.dot(wh, t[c * H:(c + 1) * H],
                          preferred_element_type=jnp.float32)   # (hout, wout)
            if pad_val is not None:
                # Folded-pad weights already zero the border; overwrite it
                # with pad_val in the same single full-tile store.
                res = jnp.where(interior, res, pad_val)
            out_ref[c] = res.astype(out_ref.dtype)


def _fit_resize(img, wh, wwt, hout, wout, hnew, wnew, tpad, lpad, pad_val):
    C, H, W = img.shape
    img2 = img.reshape(C * H, W)          # free view: W stays on lanes
    tw = _pick_w_tile(W)
    nk = W // tw

    kernel = functools.partial(
        _fit_kernel, C=C, H=H, hnew=hnew, wnew=wnew,
        tpad=tpad, lpad=lpad, pad_val=pad_val)

    return pl.pallas_call(
        kernel,
        out_shape=jax.ShapeDtypeStruct((C, hout, wout), img.dtype),
        grid_spec=pltpu.PrefetchScalarGridSpec(
            num_scalar_prefetch=0,
            grid=(nk,),
            in_specs=[
                pl.BlockSpec((C * H, tw), lambda k: (0, k)),
                pl.BlockSpec((hout, H), lambda k: (0, 0)),
                pl.BlockSpec((tw, wout), lambda k: (k, 0)),
            ],
            out_specs=pl.BlockSpec((C, hout, wout), lambda k: (0, 0, 0)),
            scratch_shapes=[pltpu.VMEM((C * H, wout), jnp.float32)],
        ),
        compiler_params=pltpu.CompilerParams(
            dimension_semantics=("arbitrary",),     # W axis is a reduction
            vmem_limit_bytes=64 * 1024 * 1024,
        ),
    )(img2, wh, wwt)


# ----------------------------------------------------------------------------
# Wrapper mirroring Fit.forward
# ----------------------------------------------------------------------------
class FitPallas:
    def __init__(self, bounds, grow: bool = True, pad=None):
        self.bounds = (bounds, bounds) if isinstance(bounds, int) else bounds
        self.grow = grow
        self.pad = pad
        # TODO(synk): only LANCZOS interpolation is implemented (the module's
        # default); other InterpolationMode values are not supported.

    def __call__(self, img: jnp.ndarray) -> jnp.ndarray:
        # layout: img is (C, H, W)
        C, himg, wimg = img.shape
        hbound, wbound = self.bounds
        hscale = hbound / himg
        wscale = wbound / wimg
        if not self.grow:
            hscale = min(hscale, 1.0)
            wscale = min(wscale, 1.0)
        scale = min(hscale, wscale)
        if scale == 1.0:
            # Matches reference semantics: early-return even when pad is set.
            return img
        hnew = min(round(himg * scale), hbound)
        wnew = min(round(wimg * scale), wbound)

        if self.pad is None:
            hout, wout, tpad, lpad, pad_val = hnew, wnew, 0, 0, None
        else:
            hout, wout = hbound, wbound
            tpad = (hbound - hnew) // 2
            lpad = (wbound - wnew) // 2
            pad_val = float(self.pad)

        wh = _lanczos_weights(himg, hnew, hout, tpad)                  # (hout, H)
        wwt = _lanczos_weights(wimg, wnew, wout, lpad, transpose=True)  # (W, wout)

        return _fit_resize(img, wh, wwt, hout, wout,
                           hnew, wnew, tpad, lpad, pad_val)


# ----------------------------------------------------------------------------
# Demo
# ----------------------------------------------------------------------------
if __name__ == "__main__":
    key = jax.random.PRNGKey(0)
    # Small image: 3 channels, height 16, width 24; bounds = (8, 8).
    img = jax.random.uniform(key, (3, 16, 24), dtype=jnp.float32)

    # Pad path: resize to fit (8, 8) then embed with constant 0.5.
    fit = FitPallas(bounds=(8, 8), grow=True, pad=0.5)
    out = jax.block_until_ready(fit(img))
    assert out.shape == (3, 8, 8), out.shape
    assert out.dtype == jnp.float32

    # No-pad path: scale = 1/3 -> (round(16/3) = 5, 8).
    fit_nopad = FitPallas(bounds=(8, 8), grow=True, pad=None)
    out2 = jax.block_until_ready(fit_nopad(img))
    assert out2.shape == (3, 5, 8), out2.shape
    assert out2.dtype == jnp.float32

    print("KERNEL_OK")
</pallas_src>

<mosaic_0001>
module attributes {stable_mosaic.version = 11 : i64} {
  func.func @_fit_kernel(%arg0: i32, %arg1: memref<48x24xf32, #tpu.memory_space<vmem>>, %arg2: memref<8x16xbf16, #tpu.memory_space<vmem>>, %arg3: memref<24x8xbf16, #tpu.memory_space<vmem>>, %arg4: memref<3x8x8xf32, #tpu.memory_space<vmem>>, %arg5: memref<48x8xf32, #tpu.memory_space<vmem>>) attributes {dimension_semantics = [#tpu.dimension_semantics<arbitrary>], iteration_bounds = array<i64: 1>, scalar_prefetch = 0 : i64, scratch_operands = 1 : i64, tpu.core_type = #tpu.core_type<tc>, window_params = [{transform_indices = @transform_0, window_bounds = array<i64: 48, 24>}, {pipeline_mode = #tpu.pipeline_mode<synchronous>, transform_indices = @transform_1, window_bounds = array<i64: 8, 16>}, {transform_indices = @transform_2, window_bounds = array<i64: 24, 8>}, {pipeline_mode = #tpu.pipeline_mode<synchronous>, transform_indices = @transform_3, window_bounds = array<i64: 3, 8, 8>}]} {
    %c0_i32 = arith.constant 0 : i32
    %0 = arith.cmpi eq, %arg0, %c0_i32 : i32
    %1 = arith.extui %0 : i1 to i32
    %c0_i32_0 = arith.constant 0 : i32
    %2 = arith.cmpi ne, %1, %c0_i32_0 : i32
    scf.if %2 {
      %cst_10 = arith.constant 0.000000e+00 : f32
      %13 = vector.broadcast %cst_10 : f32 to vector<48x8xf32>
      %c0_11 = arith.constant 0 : index
      %c0_12 = arith.constant 0 : index
      %14 = vector.load %arg5[%c0_11, %c0_12] : memref<48x8xf32, #tpu.memory_space<vmem>>, vector<48x8xf32>
      tpu.vector_store %arg5[%c0_11, %c0_12], %13 {strides = array<i32>} : memref<48x8xf32, #tpu.memory_space<vmem>>, vector<48x8xf32>,
    } else {
    }
    %c0 = arith.constant 0 : index
    %c0_1 = arith.constant 0 : index
    %3 = vector.load %arg1[%c0, %c0_1] : memref<48x24xf32, #tpu.memory_space<vmem>>, vector<48x24xf32>
    %4 = arith.truncf %3 : vector<48x24xf32> to vector<48x24xbf16>
    %c0_2 = arith.constant 0 : index
    %c0_3 = arith.constant 0 : index
    %5 = vector.load %arg5[%c0_2, %c0_3] : memref<48x8xf32, #tpu.memory_space<vmem>>, vector<48x8xf32>
    %c0_4 = arith.constant 0 : index
    %c0_5 = arith.constant 0 : index
    %6 = vector.load %arg3[%c0_4, %c0_5] : memref<24x8xbf16, #tpu.memory_space<vmem>>, vector<24x8xbf16>
    %cst = arith.constant dense<0.000000e+00> : vector<48x8xf32>
    %7 = tpu.matmul %4, %6, %cst {dimension_numbers = #tpu.dot_dimension_numbers<[1], [0], [0], [1], [0, 0, 1, 1], [], []>} : vector<48x24xbf16>, vector<24x8xbf16>, vector<48x8xf32> -> vector<48x8xf32>
    %8 = arith.addf %5, %7 : vector<48x8xf32>
    %c0_6 = arith.constant 0 : index
    %c0_7 = arith.constant 0 : index
    %9 = vector.load %arg5[%c0_6, %c0_7] : memref<48x8xf32, #tpu.memory_space<vmem>>, vector<48x8xf32>
    tpu.vector_store %arg5[%c0_6, %c0_7], %8 {strides = array<i32>} : memref<48x8xf32, #tpu.memory_space<vmem>>, vector<48x8xf32>,
    %c0_i32_8 = arith.constant 0 : i32
    %10 = arith.cmpi eq, %arg0, %c0_i32_8 : i32
    %11 = arith.extui %10 : i1 to i32
    %c0_i32_9 = arith.constant 0 : i32
    %12 = arith.cmpi ne, %11, %c0_i32_9 : i32
    scf.if %12 {
      %c0_10 = arith.constant 0 : index
      %c0_11 = arith.constant 0 : index
      %13 = vector.load %arg5[%c0_10, %c0_11] : memref<48x8xf32, #tpu.memory_space<vmem>>, vector<48x8xf32>
      %14 = arith.truncf %13 : vector<48x8xf32> to vector<48x8xbf16>
      %c0_12 = arith.constant 0 : index
      %c0_13 = arith.constant 0 : index
      %15 = vector.load %arg2[%c0_12, %c0_13] : memref<8x16xbf16, #tpu.memory_space<vmem>>, vector<8x16xbf16>
      %16 = tpu.iota {dimensions = array<i32: 0>} : vector<8x8xi32>
      %17 = tpu.iota {dimensions = array<i32: 1>} : vector<8x8xi32>
      %c1_i32 = arith.constant 1 : i32
      %18 = vector.broadcast %c1_i32 : i32 to vector<8x8xi32>
      %19 = arith.cmpi sge, %16, %18 : vector<8x8xi32>
      %c6_i32 = arith.constant 6 : i32
      %20 = vector.broadcast %c6_i32 : i32 to vector<8x8xi32>
      %21 = arith.cmpi slt, %16, %20 : vector<8x8xi32>
      %22 = arith.andi %19, %21 : vector<8x8xi1>
      %c0_i32_14 = arith.constant 0 : i32
      %23 = vector.broadcast %c0_i32_14 : i32 to vector<8x8xi32>
      %24 = arith.cmpi sge, %17, %23 : vector<8x8xi32>
      %25 = arith.andi %22, %24 : vector<8x8xi1>
      %c8_i32 = arith.constant 8 : i32
      %26 = vector.broadcast %c8_i32 : i32 to vector<8x8xi32>
      %27 = arith.cmpi slt, %17, %26 : vector<8x8xi32>
      %28 = arith.andi %25, %27 : vector<8x8xi1>
      %29 = vector.extract_strided_slice %14 {offsets = [0, 0], sizes = [16, 8], strides = [1, 1]} : vector<48x8xbf16> to vector<16x8xbf16>
      %cst_15 = arith.constant dense<0.000000e+00> : vector<8x8xf32>
      %30 = tpu.matmul %15, %29, %cst_15 {dimension_numbers = #tpu.dot_dimension_numbers<[1], [0], [0], [1], [0, 0, 1, 1], [], []>} : vector<8x16xbf16>, vector<16x8xbf16>, vector<8x8xf32> -> vector<8x8xf32>
      %cst_16 = arith.constant 5.000000e-01 : f32
      %31 = vector.broadcast %cst_16 : f32 to vector<8x8xf32>
      %32 = arith.select %28, %30, %31 : vector<8x8xi1>, vector<8x8xf32>
      %c0_17 = arith.constant 0 : index
      %c0_18 = arith.constant 0 : index
      %c0_19 = arith.constant 0 : index
      %33 = vector.load %arg4[%c0_17, %c0_18, %c0_19] : memref<3x8x8xf32, #tpu.memory_space<vmem>>, vector<1x8x8xf32>
      %34 = vector.shape_cast %33 : vector<1x8x8xf32> to vector<8x8xf32>
      %35 = vector.shape_cast %32 : vector<8x8xf32> to vector<1x8x8xf32>
      tpu.vector_store %arg4[%c0_17, %c0_18, %c0_19], %35 {strides = array<i32>} : memref<3x8x8xf32, #tpu.memory_space<vmem>>, vector<1x8x8xf32>,
      %36 = vector.extract_strided_slice %14 {offsets = [16, 0], sizes = [16, 8], strides = [1, 1]} : vector<48x8xbf16> to vector<16x8xbf16>
      %cst_20 = arith.constant dense<0.000000e+00> : vector<8x8xf32>
      %37 = tpu.matmul %15, %36, %cst_20 {dimension_numbers = #tpu.dot_dimension_numbers<[1], [0], [0], [1], [0, 0, 1, 1], [], []>} : vector<8x16xbf16>, vector<16x8xbf16>, vector<8x8xf32> -> vector<8x8xf32>
      %cst_21 = arith.constant 5.000000e-01 : f32
      %38 = vector.broadcast %cst_21 : f32 to vector<8x8xf32>
      %39 = arith.select %28, %37, %38 : vector<8x8xi1>, vector<8x8xf32>
      %c1 = arith.constant 1 : index
      %c0_22 = arith.constant 0 : index
      %c0_23 = arith.constant 0 : index
      %40 = vector.load %arg4[%c1, %c0_22, %c0_23] : memref<3x8x8xf32, #tpu.memory_space<vmem>>, vector<1x8x8xf32>
      %41 = vector.shape_cast %40 : vector<1x8x8xf32> to vector<8x8xf32>
      %42 = vector.shape_cast %39 : vector<8x8xf32> to vector<1x8x8xf32>
      tpu.vector_store %arg4[%c1, %c0_22, %c0_23], %42 {strides = array<i32>} : memref<3x8x8xf32, #tpu.memory_space<vmem>>, vector<1x8x8xf32>,
      %43 = vector.extract_strided_slice %14 {offsets = [32, 0], sizes = [16, 8], strides = [1, 1]} : vector<48x8xbf16> to vector<16x8xbf16>
      %cst_24 = arith.constant dense<0.000000e+00> : vector<8x8xf32>
      %44 = tpu.matmul %15, %43, %cst_24 {dimension_numbers = #tpu.dot_dimension_numbers<[1], [0], [0], [1], [0, 0, 1, 1], [], []>} : vector<8x16xbf16>, vector<16x8xbf16>, vector<8x8xf32> -> vector<8x8xf32>
      %cst_25 = arith.constant 5.000000e-01 : f32
      %45 = vector.broadcast %cst_25 : f32 to vector<8x8xf32>
      %46 = arith.select %28, %44, %45 : vector<8x8xi1>, vector<8x8xf32>
      %c2 = arith.constant 2 : index
      %c0_26 = arith.constant 0 : index
      %c0_27 = arith.constant 0 : index
      %47 = vector.load %arg4[%c2, %c0_26, %c0_27] : memref<3x8x8xf32, #tpu.memory_space<vmem>>, vector<1x8x8xf32>
      %48 = vector.shape_cast %47 : vector<1x8x8xf32> to vector<8x8xf32>
      %49 = vector.shape_cast %46 : vector<8x8xf32> to vector<1x8x8xf32>
      tpu.vector_store %arg4[%c2, %c0_26, %c0_27], %49 {strides = array<i32>} : memref<3x8x8xf32, #tpu.memory_space<vmem>>, vector<1x8x8xf32>,
    } else {
    }
    return
  }
  func.func @transform_0(%arg0: i32) -> (i32, i32) {
    %c0_i32 = arith.constant 0 : i32
    %c0_i32_0 = arith.constant 0 : i32
    return %c0_i32, %arg0 : i32, i32
  }
  func.func @transform_1(%arg0: i32) -> (i32, i32) {
    %c0_i32 = arith.constant 0 : i32
    %c0_i32_0 = arith.constant 0 : i32
    %c0_i32_1 = arith.constant 0 : i32
    return %c0_i32, %c0_i32_0 : i32, i32
  }
  func.func @transform_2(%arg0: i32) -> (i32, i32) {
    %c0_i32 = arith.constant 0 : i32
    %c0_i32_0 = arith.constant 0 : i32
    return %arg0, %c0_i32 : i32, i32
  }
  func.func @transform_3(%arg0: i32) -> (i32, i32, i32) {
    %c0_i32 = arith.constant 0 : i32
    %c0_i32_0 = arith.constant 0 : i32
    %c0_i32_1 = arith.constant 0 : i32
    %c0_i32_2 = arith.constant 0 : i32
    return %c0_i32, %c0_i32_0, %c0_i32_1 : i32, i32, i32
  }
}

</mosaic_0001>

<llo_original>
// kernel: tpu_custom_call.1
$region0: #{tpu_custom_call.1}
  #allocation0 [shape = 'u32[]', space=smem, size = 0x4, offset = 0x4, fixed_abs, tag = 'smem constant byte address 0x4 - core index']
  #allocation1 [shape = 'u32[144,128]{1,0:T(1,128)}', space=vmem, size = 0x12000, scoped, tag = 'internal scratch']
  #allocation2 [shape = 'f32[48,8]{1,0:T(8,128)}', space=vmem, size = 0x6000, scoped, tag = 'scratch operand']
  %s0 = inlined_call_operand.hbm [shape: f32[48,24], index: 0, kind: input, shape index: {}]
  %s1 = inlined_call_operand.hbm [shape: bf16[8,16], index: 1, kind: input, shape index: {}]
  %s2 = inlined_call_operand.hbm [shape: bf16[24,8], index: 2, kind: input, shape index: {}]
  %s3 = inlined_call_operand.hbm [shape: f32[3,8,8], index: 3, kind: output, shape index: {}]
  %s4 = sld [smem:[#allocation0]]
  $region42: #{tpu_custom_call.1} parent=0
    _
  %s6 = ssub.s32 1, %s4
  %s7 = scalar_select 0, %s6, %s4
  $region1: #{tpu_custom_call.1} parent=0
    #allocation3 [shape = 'u8[24576]{0}', space=vmem, size = 0x6000, scoped, tag = 'input window, operand 0, single buffered']
    #allocation4 [shape = 's32[1]{0}', space=sflag, size = 0x4, scoped, tag = 'scoped memory for tpu_custom_call.1']
    #allocation5 [shape = 's32[1]{0}', space=sflag, size = 0x4, scoped, tag = 'scoped memory for tpu_custom_call.1']
    #allocation6 [shape = 'u8[2048]{0}', space=vmem, size = 0x800, scoped, tag = 'input window, operand 1, single buffered']
    #allocation7 [shape = 's32[1]{0}', space=sflag, size = 0x4, scoped, tag = 'scoped memory for tpu_custom_call.1']
    #allocation8 [shape = 'u8[6144]{0}', space=vmem, size = 0x1800, scoped, tag = 'input window, operand 2, single buffered']
    #allocation9 [shape = 'u8[12288]{0}', space=vmem, size = 0x3000, scoped, tag = 'output window, operand 0, single buffered']
    %8 = vsyncpa [#allocation4], 0
    %9 = vsyncpa [#allocation7], 0
    %10 = vsyncpa [#allocation5], 0
    // Predicated region
    $region2: #{tpu_custom_call.1} parent=1 // pred_check
      _
    $region3: #{tpu_custom_call.1} parent=1 // pred_check_branch
      %12 = sbr.rel (0) target = $region5
    $region4: #{tpu_custom_call.1} parent=1 // pred_region
      %s14 = ssub.s32 768, 768
      %15 = vsyncadd [#allocation4], %s14
      %s16 = sshll.u32 [#allocation3], 4
      %s17 = int_to_ptr.vmem [resolvable:$true] %s16
      %22 = dma.hbm_to_vmem [thread:$0]  %s0, 768, %s17, [#allocation4], 128, 128, 8
    $region5: #{tpu_custom_call.1} parent=1 // pred_fallthru
      _
    // Predicated region
    $region6: #{tpu_custom_call.1} parent=1 // pred_check
      _
    $region7: #{tpu_custom_call.1} parent=1 // pred_check_branch
      %24 = sbr.rel (0) target = $region9
    $region8: #{tpu_custom_call.1} parent=1 // pred_region
      %s26 = ssub.s32 64, 64
      %27 = vsyncadd [#allocation7], %s26
      %s29 = sshll.u32 [#allocation6], 4
      %s30 = int_to_ptr.vmem [resolvable:$true] %s29
      %32 = dma.hbm_to_vmem [thread:$0]  %s1, 64, %s30, [#allocation7]
    $region9: #{tpu_custom_call.1} parent=1 // pred_fallthru
      _
    // Predicated region
    $region10: #{tpu_custom_call.1} parent=1 // pred_check
      _
    $region11: #{tpu_custom_call.1} parent=1 // pred_check_branch
      %34 = sbr.rel (0) target = $region13
    $region12: #{tpu_custom_call.1} parent=1 // pred_region
      %s36 = ssub.s32 192, 192
      %37 = vsyncadd [#allocation7], %s36
      %s38 = sshll.u32 [#allocation8], 4
      %s39 = int_to_ptr.vmem [resolvable:$true] %s38
      %44 = dma.hbm_to_vmem [thread:$0]  %s2, 192, %s39, [#allocation7], 64, 64, 4
    $region13: #{tpu_custom_call.1} parent=1 // pred_fallthru
      _
    // Predicated region
    $region14: #{tpu_custom_call.1} parent=1 // pred_check
      _
    $region15: #{tpu_custom_call.1} parent=1 // pred_check_branch
      %46 = sbr.rel (0) target = $region17
    $region16: #{tpu_custom_call.1} parent=1 // pred_region
      %47 = dma.done [#allocation4], 768
    $region17: #{tpu_custom_call.1} parent=1 // pred_fallthru
      _
    // Predicated region
    $region18: #{tpu_custom_call.1} parent=1 // pred_check
      _
    $region19: #{tpu_custom_call.1} parent=1 // pred_check_branch
      %49 = sbr.rel (0) target = $region21
    $region20: #{tpu_custom_call.1} parent=1 // pred_region
      %50 = dma.done [#allocation7], 64
    $region21: #{tpu_custom_call.1} parent=1 // pred_fallthru
      _
    // Predicated region
    $region22: #{tpu_custom_call.1} parent=1 // pred_check
      _
    $region23: #{tpu_custom_call.1} parent=1 // pred_check_branch
      %52 = sbr.rel (0) target = $region25
    $region24: #{tpu_custom_call.1} parent=1 // pred_region
      %53 = dma.done [#allocation7], 192
    $region25: #{tpu_custom_call.1} parent=1 // pred_fallthru
      _
    %p55 = scmp.eq.s32.totalorder 0, 0
    // Predicated region
    $region26: #{tpu_custom_call.1} parent=1 // pred_check
      %p56 = pneg %p55
    $region27: #{tpu_custom_call.1} parent=1 // pred_check_branch
      %58 = sbr.rel (%p56) target = $region29
    $region28: #{tpu_custom_call.1} parent=1 // pred_region
      %vm59 = vcmask 64512
      %60 = vst.msk [vmem:[#allocation2] sm:$0xff] %vm59, 0.0
      %61 = vst.msk [vmem:[#allocation2 + $0x8] sm:$0xff] %vm59, 0.0
      %62 = vst.msk [vmem:[#allocation2 + $0x10] sm:$0xff] %vm59, 0.0
      %63 = vst.msk [vmem:[#allocation2 + $0x18] sm:$0xff] %vm59, 0.0
      %64 = vst.msk [vmem:[#allocation2 + $0x20] sm:$0xff] %vm59, 0.0
      %65 = vst.msk [vmem:[#allocation2 + $0x28] sm:$0xff] %vm59, 0.0
    $region29: #{tpu_custom_call.1} parent=1 // pred_fallthru
      _
    %v66 = vld [vmem:[#allocation3] sm:$0xff]
    %v67 = vld [vmem:[#allocation3 + $0x8] sm:$0xff]
    %v68 = vld [vmem:[#allocation3 + $0x10] sm:$0xff]
    %v69 = vld [vmem:[#allocation3 + $0x18] sm:$0xff]
    %v70 = vld [vmem:[#allocation3 + $0x20] sm:$0xff]
    %v71 = vld [vmem:[#allocation3 + $0x28] sm:$0xff]
    %v72 = vpack.c.bf16 %v67, %v66
    %v73 = vpack.c.bf16 %v69, %v68
    %v74 = vpack.c.bf16 %v71, %v70
    %v75 = vld [vmem:[#allocation2] sm:$0xff]
    %v76 = vld [vmem:[#allocation2 + $0x8] sm:$0xff]
    %v77 = vld [vmem:[#allocation2 + $0x10] sm:$0xff]
    %v78 = vld [vmem:[#allocation2 + $0x18] sm:$0xff]
    %v79 = vld [vmem:[#allocation2 + $0x20] sm:$0xff]
    %v80 = vld [vmem:[#allocation2 + $0x28] sm:$0xff]
    %v81 = vld [vmem:[#allocation8] sm:$0xf]
    %v82 = vld [vmem:[#allocation8 + $0x4] sm:$0xf]
    %v83 = vld [vmem:[#allocation8 + $0x8] sm:$0xf]
    %v87 = vunpack.c.l.b16 %v81
    %v88 = vunpack.c.l.b16 %v82
    %v89 = vunpack.c.l.b16 %v83
    %v90 = vpack.c.b16 %v88, %v87
    %v91 = vpack.c.b16 %v89, %v89
    %vm93 = vcmask 195584
    %v95 = vsel %vm93, %v72, 0
    %v98 = vsel %vm93, %v73, 0
    %v101 = vsel %vm93, %v74, 0
    %vm103 = vcmask 1043456
    %v105 = vsel %vm103, %v91, 0
    %107 = vmatprep.subr.bf16.mxu0 0
    %108 = vmatpush1.bf16.msra.mxu0 %v90
    %109 = vmatprep.subr.bf16.mxu0 0
    %110 = vmatpush1.bf16.msra.mxu0 %v105
    %111 = vmatprep.subr.bf16.mxu0 0
    %112 = vmatpush1.bf16.msra.mxu0 0
    %113 = vmatprep.subr.bf16.mxu0 0
    %114 = vmatpush1.bf16.msra.mxu0 0
    %115 = vmatprep.subr.bf16.mxu0 0
    %116 = vmatpush1.bf16.msra.mxu0 0
    %117 = vmatprep.subr.bf16.mxu0 0
    %118 = vmatpush1.bf16.msra.mxu0 0
    %119 = vmatprep.subr.bf16.mxu0 0
    %120 = vmatpush1.bf16.msra.mxu0 0
    %121 = vmatprep.subr.bf16.mxu0 0
    %122 = vmatpush1.bf16.msra.mxu0 0
    %123 = vmatprep.subr.bf16.mxu0 0
    %124 = vmatpush1.bf16.msra.mxu0 0
    %125 = vmatprep.subr.bf16.mxu0 0
    %126 = vmatpush1.bf16.msra.mxu0 0
    %127 = vmatprep.subr.bf16.mxu0 0
    %128 = vmatpush1.bf16.msra.mxu0 0
    %129 = vmatprep.subr.bf16.mxu0 0
    %130 = vmatpush1.bf16.msra.mxu0 0
    %131 = vmatprep.subr.bf16.mxu0 0
    %132 = vmatpush1.bf16.msra.mxu0 0
    %133 = vmatprep.subr.bf16.mxu0 0
    %134 = vmatpush1.bf16.msra.mxu0 0
    %135 = vmatprep.subr.bf16.mxu0 0
    %136 = vmatpush1.bf16.msra.mxu0 0
    %137 = vmatprep.subr.bf16.mxu0 0
    %138 = vmatpush1.bf16.msra.mxu0 0
    %139 = vmatprep.mubr.bf16.mxu0 0
    %140 = vmatmul.mubr.bf16.gmra.mrb[0].mxu0 %v95
    %v141 = vpop.f32.mrb[0].mxu0
    %v142 = vadd.f32 0.0, %v141
    %v143 = vpop.f32.mrb[0].mxu0
    %v144 = vpop.f32.mrb[0].mxu0
    %v145 = vadd.f32 0.0, %v144
    %v146 = vpop.f32.mrb[0].mxu0
    %147 = vmatprep.mubr.bf16.mxu0 0
    %148 = vmatmul.mubr.bf16.gmra.mrb[0].mxu0 %v98
    %v149 = vpop.f32.mrb[0].mxu0
    %v150 = vadd.f32 0.0, %v149
    %v151 = vpop.f32.mrb[0].mxu0
    %v152 = vpop.f32.mrb[0].mxu0
    %v153 = vadd.f32 0.0, %v152
    %v154 = vpop.f32.mrb[0].mxu0
    %155 = vmatprep.mubr.bf16.mxu0 0
    %156 = vmatmul.mubr.bf16.gmra.mrb[0].mxu0 %v101
    %v157 = vpop.f32.mrb[0].mxu0
    %v158 = vadd.f32 0.0, %v157
    %v159 = vpop.f32.mrb[0].mxu0
    %v160 = vpop.f32.mrb[0].mxu0
    %v161 = vadd.f32 0.0, %v160
    %v162 = vpop.f32.mrb[0].mxu0
    %163 = vdwg.mxu0
    %v164 = vadd.f32 %v75, %v142
    %v165 = vadd.f32 %v76, %v145
    %v166 = vadd.f32 %v77, %v150
    %v167 = vadd.f32 %v78, %v153
    %v168 = vadd.f32 %v79, %v158
    %v169 = vadd.f32 %v80, %v161
    %vm170 = vcmask 64512
    %171 = vst.msk [vmem:[#allocation2] sm:$0xff] %vm170, %v164
    %172 = vst.msk [vmem:[#allocation2 + $0x8] sm:$0xff] %vm170, %v165
    %173 = vst.msk [vmem:[#allocation2 + $0x10] sm:$0xff] %vm170, %v166
    %174 = vst.msk [vmem:[#allocation2 + $0x18] sm:$0xff] %vm170, %v167
    %175 = vst.msk [vmem:[#allocation2 + $0x20] sm:$0xff] %vm170, %v168
    %176 = vst.msk [vmem:[#allocation2 + $0x28] sm:$0xff] %vm170, %v169
    // Predicated region
    $region30: #{tpu_custom_call.1} parent=1 // pred_check
      %p177 = pneg %p55
    $region31: #{tpu_custom_call.1} parent=1 // pred_check_branch
      %179 = sbr.rel (%p177) target = $region33
    $region32: #{tpu_custom_call.1} parent=1 // pred_region
      %v180 = vld [vmem:[#allocation2] sm:$0xff]
      %v181 = vld [vmem:[#allocation2 + $0x8] sm:$0xff]
      %v182 = vld [vmem:[#allocation2 + $0x10] sm:$0xff]
      %v183 = vld [vmem:[#allocation2 + $0x18] sm:$0xff]
      %v184 = vld [vmem:[#allocation2 + $0x20] sm:$0xff]
      %v185 = vld [vmem:[#allocation2 + $0x28] sm:$0xff]
      %v186 = vpack.c.bf16 %v181, %v180
      %v187 = vpack.c.bf16 %v183, %v182
      %v188 = vpack.c.bf16 %v185, %v184
      %v189 = vld [vmem:[#allocation6] sm:$0xf]
      %v190 = vlaneseq
      %v191 = vshrl.u32 %v190, 7
      %v192 = vlaneseq
      %v193 = vand.u32 %v192, 127
      %vm194 = vcmp.ge.s32.totalorder %v191, 1
      %vm195 = vcmp.lt.s32.totalorder %v191, 6
      %vm196 = vmand %vm194, %vm195
      %vm197 = vcmp.ge.s32.totalorder %v193, 0
      %vm198 = vmand %vm196, %vm197
      %vm199 = vcmp.lt.s32.totalorder %v193, 8
      %vm200 = vmand %vm198, %vm199
      %vm201 = vcmask 130048
      %v203 = vsel %vm201, %v189, 0
      %205 = vmatprep.subr.bf16.mxu0 0
      %206 = vmatpush1.bf16.msra.mxu0 %v186
      %207 = vmatprep.subr.bf16.mxu0 0
      %208 = vmatpush1.bf16.msra.mxu0 0
      %209 = vmatprep.subr.bf16.mxu0 0
      %210 = vmatpush1.bf16.msra.mxu0 0
      %211 = vmatprep.subr.bf16.mxu0 0
      %212 = vmatpush1.bf16.msra.mxu0 0
      %213 = vmatprep.subr.bf16.mxu0 0
      %214 = vmatpush1.bf16.msra.mxu0 0
      %215 = vmatprep.subr.bf16.mxu0 0
      %216 = vmatpush1.bf16.msra.mxu0 0
      %217 = vmatprep.subr.bf16.mxu0 0
      %218 = vmatpush1.bf16.msra.mxu0 0
      %219 = vmatprep.subr.bf16.mxu0 0
      %220 = vmatpush1.bf16.msra.mxu0 0
      %221 = vmatprep.subr.bf16.mxu0 0
      %222 = vmatpush1.bf16.msra.mxu0 0
      %223 = vmatprep.subr.bf16.mxu0 0
      %224 = vmatpush1.bf16.msra.mxu0 0
      %225 = vmatprep.subr.bf16.mxu0 0
      %226 = vmatpush1.bf16.msra.mxu0 0
      %227 = vmatprep.subr.bf16.mxu0 0
      %228 = vmatpush1.bf16.msra.mxu0 0
      %229 = vmatprep.subr.bf16.mxu0 0
      %230 = vmatpush1.bf16.msra.mxu0 0
      %231 = vmatprep.subr.bf16.mxu0 0
      %232 = vmatpush1.bf16.msra.mxu0 0
      %233 = vmatprep.subr.bf16.mxu0 0
      %234 = vmatpush1.bf16.msra.mxu0 0
      %235 = vmatprep.subr.bf16.mxu0 0
      %236 = vmatpush1.bf16.msra.mxu0 0
      %237 = vmatprep.mubr.bf16.mxu0 0
      %238 = vmatmul.mubr.bf16.gmra.mrb[0].mxu0 %v203
      %v239 = vpop.f32.mrb[0].mxu0
      %v240 = vadd.f32 0.0, %v239
      %v241 = vpop.f32.mrb[0].mxu0
      %v242 = vpop.f32.mrb[0].mxu0
      %v243 = vpop.f32.mrb[0].mxu0
      %244 = vdwg.mxu0
      %v245 = vsel %vm200, %v240, 0.5
      %246 = vst.msk [vmem:[#allocation9] sm:$0xff] %vm170, %v245
      %247 = vmatprep.subr.bf16.mxu0 0
      %248 = vmatpush1.bf16.msra.mxu0 %v187
      %249 = vmatprep.subr.bf16.mxu0 0
      %250 = vmatpush1.bf16.msra.mxu0 0
      %251 = vmatprep.subr.bf16.mxu0 0
      %252 = vmatpush1.bf16.msra.mxu0 0
      %253 = vmatprep.subr.bf16.mxu0 0
      %254 = vmatpush1.bf16.msra.mxu0 0
      %255 = vmatprep.subr.bf16.mxu0 0
      %256 = vmatpush1.bf16.msra.mxu0 0
      %257 = vmatprep.subr.bf16.mxu0 0
      %258 = vmatpush1.bf16.msra.mxu0 0
      %259 = vmatprep.subr.bf16.mxu0 0
      %260 = vmatpush1.bf16.msra.mxu0 0
      %261 = vmatprep.subr.bf16.mxu0 0
      %262 = vmatpush1.bf16.msra.mxu0 0
      %263 = vmatprep.subr.bf16.mxu0 0
      %264 = vmatpush1.bf16.msra.mxu0 0
      %265 = vmatprep.subr.bf16.mxu0 0
      %266 = vmatpush1.bf16.msra.mxu0 0
      %267 = vmatprep.subr.bf16.mxu0 0
      %268 = vmatpush1.bf16.msra.mxu0 0
      %269 = vmatprep.subr.bf16.mxu0 0
      %270 = vmatpush1.bf16.msra.mxu0 0
      %271 = vmatprep.subr.bf16.mxu0 0
      %272 = vmatpush1.bf16.msra.mxu0 0
      %273 = vmatprep.subr.bf16.mxu0 0
      %274 = vmatpush1.bf16.msra.mxu0 0
      %275 = vmatprep.subr.bf16.mxu0 0
      %276 = vmatpush1.bf16.msra.mxu0 0
      %277 = vmatprep.subr.bf16.mxu0 0
      %278 = vmatpush1.bf16.msra.mxu0 0
      %279 = vmatprep.mubr.bf16.mxu0 0
      %280 = vmatmul.mubr.bf16.gmra.mrb[0].mxu0 %v203
      %v281 = vpop.f32.mrb[0].mxu0
      %v282 = vadd.f32 0.0, %v281
      %v283 = vpop.f32.mrb[0].mxu0
      %v284 = vpop.f32.mrb[0].mxu0
      %v285 = vpop.f32.mrb[0].mxu0
      %286 = vdwg.mxu0
      %v287 = vsel %vm200, %v282, 0.5
      %s288 = scalar_lea.vmem [#allocation9], 8
      %289 = vst.msk [vmem:[%s288] sm:$0xff] %vm170, %v287
      %290 = vmatprep.subr.bf16.mxu0 0
      %291 = vmatpush1.bf16.msra.mxu0 %v188
      %292 = vmatprep.subr.bf16.mxu0 0
      %293 = vmatpush1.bf16.msra.mxu0 0
      %294 = vmatprep.subr.bf16.mxu0 0
      %295 = vmatpush1.bf16.msra.mxu0 0
      %296 = vmatprep.subr.bf16.mxu0 0
      %297 = vmatpush1.bf16.msra.mxu0 0
      %298 = vmatprep.subr.bf16.mxu0 0
      %299 = vmatpush1.bf16.msra.mxu0 0
      %300 = vmatprep.subr.bf16.mxu0 0
      %301 = vmatpush1.bf16.msra.mxu0 0
      %302 = vmatprep.subr.bf16.mxu0 0
      %303 = vmatpush1.bf16.msra.mxu0 0
      %304 = vmatprep.subr.bf16.mxu0 0
      %305 = vmatpush1.bf16.msra.mxu0 0
      %306 = vmatprep.subr.bf16.mxu0 0
      %307 = vmatpush1.bf16.msra.mxu0 0
      %308 = vmatprep.subr.bf16.mxu0 0
      %309 = vmatpush1.bf16.msra.mxu0 0
      %310 = vmatprep.subr.bf16.mxu0 0
      %311 = vmatpush1.bf16.msra.mxu0 0
      %312 = vmatprep.subr.bf16.mxu0 0
      %313 = vmatpush1.bf16.msra.mxu0 0
      %314 = vmatprep.subr.bf16.mxu0 0
      %315 = vmatpush1.bf16.msra.mxu0 0
      %316 = vmatprep.subr.bf16.mxu0 0
      %317 = vmatpush1.bf16.msra.mxu0 0
      %318 = vmatprep.subr.bf16.mxu0 0
      %319 = vmatpush1.bf16.msra.mxu0 0
      %320 = vmatprep.subr.bf16.mxu0 0
      %321 = vmatpush1.bf16.msra.mxu0 0
      %322 = vmatprep.mubr.bf16.mxu0 0
      %323 = vmatmul.mubr.bf16.gmra.mrb[0].mxu0 %v203
      %v324 = vpop.f32.mrb[0].mxu0
      %v325 = vadd.f32 0.0, %v324
      %v326 = vpop.f32.mrb[0].mxu0
      %v327 = vpop.f32.mrb[0].mxu0
      %v328 = vpop.f32.mrb[0].mxu0
      %329 = vdwg.mxu0
      %v330 = vsel %vm200, %v325, 0.5
      %s331 = scalar_lea.vmem [#allocation9], 16
      %332 = vst.msk [vmem:[%s331] sm:$0xff] %vm170, %v330
    $region33: #{tpu_custom_call.1} parent=1 // pred_fallthru
      _
    // Predicated region
    $region34: #{tpu_custom_call.1} parent=1 // pred_check
      _
    $region35: #{tpu_custom_call.1} parent=1 // pred_check_branch
      %334 = sbr.rel (0) target = $region37
    $region36: #{tpu_custom_call.1} parent=1 // pred_region
      %s336 = ssub.s32 384, 384
      %337 = vsyncadd [#allocation5], %s336
      %s338 = sshll.u32 [#allocation9], 4
      %s339 = int_to_ptr.vmem [resolvable:$true] %s338
      %344 = dma.vmem_to_hbm [thread:$0]  %s339, 384, %s3, [#allocation5], 128, 128, 8
    $region37: #{tpu_custom_call.1} parent=1 // pred_fallthru
      _
    // Predicated region
    $region38: #{tpu_custom_call.1} parent=1 // pred_check
      _
    $region39: #{tpu_custom_call.1} parent=1 // pred_check_branch
      %346 = sbr.rel (0) target = $region41
    $region40: #{tpu_custom_call.1} parent=1 // pred_region
      %347 = dma.done [#allocation5], 384
    $region41: #{tpu_custom_call.1} parent=1 // pred_fallthru
      _
    %348 = vsyncpa [#allocation4], 1
    %349 = vsyncpa [#allocation7], 1
    %350 = vsyncpa [#allocation5], 1

</llo_original>
